<compile_context>
chip_gen: v5e
topology: v5e:2x2
jax: 0.10.0
libtpu: 0.0.40
codegen_flags: <defaults>
</compile_context>

<pallas_src>
import jax
import jax.numpy as jnp
from jax.experimental import pallas as pl
from jax.experimental.pallas import tpu as pltpu

NUM_CLASSES = 184      # hard-coded in Pix2PixModel.preprocess_input
LABEL_NC = 182         # opt.label_nc (clamp upper bound)
OUT_CHANNELS = 3       # RGB fake image


def _pix2pix_kernel(lbl_ref, w_ref, sem_ref, img_ref):
    # lbl_ref: (1, 1, tm) int32 labels, lane-dense (pixels on lanes).
    tm = lbl_ref.shape[-1]
    lbl = jnp.clip(lbl_ref[0].astype(jnp.int32), 0, LABEL_NC)          # clamp(0, label_nc)
    # One-hot, channel-major (classes on sublanes, pixels on lanes), built
    # directly in the store dtype (bf16: 0/1 exact) -> halves the HBM write.
    classes = jax.lax.broadcasted_iota(jnp.int32, (NUM_CLASSES, tm), 0)
    sem_ref[0] = (classes == lbl).astype(sem_ref.dtype)                # scatter_(1, label, 1.0)
    # Stand-in generator: 1x1 conv over channels (bias folded into w) + tanh.
    # Reads the one-hot back from the output VMEM block -> no extra scratch.
    y = jnp.dot(w_ref[...], sem_ref[0],
                preferred_element_type=jnp.float32)                    # (3, tm) f32
    img_ref[0] = jnp.tanh(y)


def _round_up(x, m):
    return ((x + m - 1) // m) * m


def _pick_tile(hw, tm_max):
    """Pixel-tile size (multiple of 128).  Prefers an exact divisor of hw so
    no padding is needed; awkward hw (e.g. 128*prime) falls back to the full
    tm_max with a padded tail instead of collapsing to tm=128."""
    tm_max = max(128, (tm_max // 128) * 128)
    if hw <= tm_max:
        return _round_up(hw, 128)
    if hw % 128 == 0:
        tm = tm_max
        while tm >= 512 and hw % tm != 0:
            tm -= 128
        if hw % tm == 0:
            return tm
    return tm_max


def pix2pix_forward(label_nchw, w, b, *, tm=8192):
    """label_nchw: (B, 1, H, W) integer label map.
    w: (184, 3) 1x1-conv weights, b: (1, 3) bias (stand-in generator params).
    Returns (input_semantics [B,184,H,W] bf16, fake_image [B,3,H,W] f32)."""
    B, _, H, W = label_nchw.shape
    HW = H * W
    tm = _pick_tile(HW, tm)
    hw_pad = _round_up(HW, tm)

    labels = label_nchw.astype(jnp.int32).reshape(B, 1, HW)            # pixels on lanes
    if hw_pad != HW:
        labels = jnp.pad(labels, ((0, 0), (0, 0), (0, hw_pad - HW)))

    # Fold bias into weights (each one-hot column sums to exactly 1) and cast
    # to bf16 so the MXU sees a bf16 x bf16 matmul with f32 accumulation.
    w_t = (w + b.reshape(1, OUT_CHANNELS)).T.astype(jnp.bfloat16)      # (3, 184)

    sem_flat, img_flat = pl.pallas_call(
        _pix2pix_kernel,
        out_shape=(
            jax.ShapeDtypeStruct((B, NUM_CLASSES, hw_pad), jnp.bfloat16),
            jax.ShapeDtypeStruct((B, OUT_CHANNELS, hw_pad), jnp.float32),
        ),
        grid_spec=pltpu.PrefetchScalarGridSpec(
            num_scalar_prefetch=0,
            grid=(B, hw_pad // tm),
            in_specs=[
                pl.BlockSpec((1, 1, tm), lambda bi, pi: (bi, 0, pi)),
                pl.BlockSpec((OUT_CHANNELS, NUM_CLASSES), lambda bi, pi: (0, 0)),
            ],
            out_specs=[
                pl.BlockSpec((1, NUM_CLASSES, tm), lambda bi, pi: (bi, 0, pi)),
                pl.BlockSpec((1, OUT_CHANNELS, tm), lambda bi, pi: (bi, 0, pi)),
            ],
        ),
        compiler_params=pltpu.CompilerParams(
            dimension_semantics=("parallel", "parallel")),
    )(labels, w_t)

    if hw_pad != HW:
        sem_flat = sem_flat[:, :, :HW]
        img_flat = img_flat[:, :, :HW]

    # Channel-major already: the NCHW reshape is free (no transpose), and the
    # image was produced with exactly 3 channels (no channel-slice copy).
    input_semantics = sem_flat.reshape(B, NUM_CLASSES, H, W)
    fake_image = img_flat.reshape(B, OUT_CHANNELS, H, W)
    return input_semantics, fake_image


if __name__ == "__main__":
    key = jax.random.PRNGKey(0)
    k_lbl, k_w, k_b = jax.random.split(key, 3)

    B, H, W = 2, 16, 16
    # data['label']: integer semantic label map, NCHW with 1 channel
    label = jax.random.randint(k_lbl, (B, 1, H, W), minval=0, maxval=NUM_CLASSES,
                               dtype=jnp.int32)

    # deterministic synthetic generator params (1x1 conv: 184 -> 3)
    w = 0.05 * jax.random.normal(k_w, (NUM_CLASSES, OUT_CHANNELS), jnp.float32)
    b = 0.01 * jax.random.normal(k_b, (1, OUT_CHANNELS), jnp.float32)

    sem, fake = pix2pix_forward(label, w, b)
    jax.block_until_ready((sem, fake))

    # sanity: pure-JAX reference (same folded, bf16-quantized weights as kernel)
    lbl_clamped = jnp.clip(label[:, 0].astype(jnp.int32), 0, LABEL_NC)
    sem_ref = jax.nn.one_hot(lbl_clamped, NUM_CLASSES, dtype=jnp.float32).transpose(0, 3, 1, 2)
    w_eff = (w + b.reshape(1, OUT_CHANNELS)).astype(jnp.bfloat16).astype(jnp.float32)
    fake_ref = jnp.tanh(jnp.einsum("bchw,co->bohw", sem_ref, w_eff))

    assert sem.shape == (B, NUM_CLASSES, H, W) and sem.dtype == jnp.bfloat16
    assert fake.shape == (B, OUT_CHANNELS, H, W)
    assert jnp.array_equal(sem.astype(jnp.float32), sem_ref)
    assert jnp.allclose(fake, fake_ref, atol=1e-5)

    print("KERNEL_OK")
</pallas_src>

<mosaic_0001>
module attributes {stable_mosaic.version = 11 : i64} {
  func.func @_pix2pix_kernel(%arg0: i32, %arg1: i32, %arg2: memref<1x1x256xi32, #tpu.memory_space<vmem>>, %arg3: memref<3x184xbf16, #tpu.memory_space<vmem>>, %arg4: memref<1x184x256xbf16, #tpu.memory_space<vmem>>, %arg5: memref<1x3x256xf32, #tpu.memory_space<vmem>>) attributes {dimension_semantics = [#tpu.dimension_semantics<parallel>, #tpu.dimension_semantics<parallel>], iteration_bounds = array<i64: 2, 1>, scalar_prefetch = 0 : i64, scratch_operands = 0 : i64, tpu.core_type = #tpu.core_type<tc>, window_params = [{transform_indices = @transform_0, window_bounds = array<i64: 1, 1, 256>}, {pipeline_mode = #tpu.pipeline_mode<synchronous>, transform_indices = @transform_1, window_bounds = array<i64: 3, 184>}, {transform_indices = @transform_2, window_bounds = array<i64: 1, 184, 256>}, {transform_indices = @transform_3, window_bounds = array<i64: 1, 3, 256>}]} {
    %c0 = arith.constant 0 : index
    %c0_0 = arith.constant 0 : index
    %c0_1 = arith.constant 0 : index
    %0 = vector.load %arg2[%c0, %c0_0, %c0_1] : memref<1x1x256xi32, #tpu.memory_space<vmem>>, vector<1x1x256xi32>
    %1 = vector.shape_cast %0 : vector<1x1x256xi32> to vector<1x256xi32>
    %c0_i32 = arith.constant 0 : i32
    %c182_i32 = arith.constant 182 : i32
    %2 = vector.broadcast %c0_i32 : i32 to vector<1x256xi32>
    %3 = arith.maxsi %2, %1 : vector<1x256xi32>
    %4 = vector.broadcast %c182_i32 : i32 to vector<1x256xi32>
    %5 = arith.minsi %4, %3 : vector<1x256xi32>
    %6 = tpu.iota {dimensions = array<i32: 0>} : vector<184x256xi32>
    %7 = vector.broadcast %5 : vector<1x256xi32> to vector<184x256xi32>
    %8 = arith.cmpi eq, %6, %7 : vector<184x256xi32>
    %9 = arith.extui %8 : vector<184x256xi1> to vector<184x256xi32>
    %10 = arith.sitofp %9 : vector<184x256xi32> to vector<184x256xf32>
    %11 = arith.truncf %10 : vector<184x256xf32> to vector<184x256xbf16>
    %c0_2 = arith.constant 0 : index
    %c0_3 = arith.constant 0 : index
    %c0_4 = arith.constant 0 : index
    %12 = vector.load %arg4[%c0_2, %c0_3, %c0_4] : memref<1x184x256xbf16, #tpu.memory_space<vmem>>, vector<1x184x256xbf16>
    %13 = vector.shape_cast %12 : vector<1x184x256xbf16> to vector<184x256xbf16>
    %14 = vector.shape_cast %11 : vector<184x256xbf16> to vector<1x184x256xbf16>
    tpu.vector_store %arg4[%c0_2, %c0_3, %c0_4], %14 {strides = array<i32>} : memref<1x184x256xbf16, #tpu.memory_space<vmem>>, vector<1x184x256xbf16>,
    %c0_5 = arith.constant 0 : index
    %c0_6 = arith.constant 0 : index
    %15 = vector.load %arg3[%c0_5, %c0_6] : memref<3x184xbf16, #tpu.memory_space<vmem>>, vector<3x184xbf16>
    %c0_7 = arith.constant 0 : index
    %c0_8 = arith.constant 0 : index
    %c0_9 = arith.constant 0 : index
    %16 = vector.load %arg4[%c0_7, %c0_8, %c0_9] : memref<1x184x256xbf16, #tpu.memory_space<vmem>>, vector<1x184x256xbf16>
    %17 = vector.shape_cast %16 : vector<1x184x256xbf16> to vector<184x256xbf16>
    %cst = arith.constant dense<0.000000e+00> : vector<3x256xf32>
    %18 = tpu.matmul %15, %17, %cst {dimension_numbers = #tpu.dot_dimension_numbers<[1], [0], [0], [1], [0, 0, 1, 1], [], []>} : vector<3x184xbf16>, vector<184x256xbf16>, vector<3x256xf32> -> vector<3x256xf32>
    %19 = math.tanh %18 : vector<3x256xf32>
    %c0_10 = arith.constant 0 : index
    %c0_11 = arith.constant 0 : index
    %c0_12 = arith.constant 0 : index
    %20 = vector.load %arg5[%c0_10, %c0_11, %c0_12] : memref<1x3x256xf32, #tpu.memory_space<vmem>>, vector<1x3x256xf32>
    %21 = vector.shape_cast %20 : vector<1x3x256xf32> to vector<3x256xf32>
    %22 = vector.shape_cast %19 : vector<3x256xf32> to vector<1x3x256xf32>
    tpu.vector_store %arg5[%c0_10, %c0_11, %c0_12], %22 {strides = array<i32>} : memref<1x3x256xf32, #tpu.memory_space<vmem>>, vector<1x3x256xf32>,
    return
  }
  func.func @transform_0(%arg0: i32, %arg1: i32) -> (i32, i32, i32) {
    %c0_i32 = arith.constant 0 : i32
    %c0_i32_0 = arith.constant 0 : i32
    return %arg0, %c0_i32, %arg1 : i32, i32, i32
  }
  func.func @transform_1(%arg0: i32, %arg1: i32) -> (i32, i32) {
    %c0_i32 = arith.constant 0 : i32
    %c0_i32_0 = arith.constant 0 : i32
    %c0_i32_1 = arith.constant 0 : i32
    return %c0_i32, %c0_i32_0 : i32, i32
  }
  func.func @transform_2(%arg0: i32, %arg1: i32) -> (i32, i32, i32) {
    %c0_i32 = arith.constant 0 : i32
    %c0_i32_0 = arith.constant 0 : i32
    return %arg0, %c0_i32, %arg1 : i32, i32, i32
  }
  func.func @transform_3(%arg0: i32, %arg1: i32) -> (i32, i32, i32) {
    %c0_i32 = arith.constant 0 : i32
    %c0_i32_0 = arith.constant 0 : i32
    return %arg0, %c0_i32, %arg1 : i32, i32, i32
  }
}

</mosaic_0001>

<llo_original>
// kernel: tpu_custom_call.1
$region0: #{tpu_custom_call.1}
  #allocation0 [shape = 'u32[]', space=smem, size = 0x4, offset = 0x4, fixed_abs, tag = 'smem constant byte address 0x4 - core index']
  #allocation1 [shape = 'u32[72,128]{1,0:T(1,128)}', space=vmem, size = 0x9000, scoped, tag = 'internal scratch']
  %s0 = inlined_call_operand.hbm [shape: s32[2,1,256], index: 0, kind: input, shape index: {}]
  %s1 = inlined_call_operand.hbm [shape: bf16[3,184], index: 1, kind: input, shape index: {}]
  %s2 = inlined_call_operand.hbm [shape: bf16[2,184,256], index: 2, kind: output, shape index: {0}]
  %s3 = inlined_call_operand.vmem [shape: f32[2,3,256], index: 3, kind: output, shape index: {1}]
  %4 = xla_tuple %s2, %s3
  %s5 = sld [smem:[#allocation0]]
  $region57: #{tpu_custom_call.1} parent=0
    _
  %s7 = ssub.s32 1, %s5
  %s8 = scalar_select 0, %s7, %s5
  $region1: #{tpu_custom_call.1} parent=0
    #allocation2 [shape = 'u8[2048]{0}', space=vmem, size = 0x800, scoped, tag = 'input window, operand 0']
    #allocation3 [shape = 's32[2]{0}', space=sflag, size = 0x8, scoped, tag = 'scoped memory for tpu_custom_call.1']
    #allocation4 [shape = 's32[2]{0}', space=sflag, size = 0x8, scoped, tag = 'scoped memory for tpu_custom_call.1']
    #allocation5 [shape = 'u8[2048]{0}', space=vmem, size = 0x800, scoped, tag = 'input window, operand 1, single buffered']
    #allocation6 [shape = 's32[1]{0}', space=sflag, size = 0x4, scoped, tag = 'scoped memory for tpu_custom_call.1']
    #allocation7 [shape = 'u8[188416]{0}', space=vmem, size = 0x2e000, scoped, tag = 'output window, operand 0']
    %9 = vsyncpa [#allocation3], 0
    %s10 = scalar_lea.sflag [#allocation3], 1
    %11 = vsyncpa %s10, 0
    %12 = vsyncpa [#allocation6], 0
    %13 = vsyncpa [#allocation4], 0
    %s14 = scalar_lea.sflag [#allocation4], 1
    %15 = vsyncpa %s14, 0
    loop: start=0, step=1, limit=4
    $region2: #{tpu_custom_call.1} parent=1 // loop_pre_header
      _
    $region3: #{tpu_custom_call.1} parent=1 // loop_header
      %s17 = sphi 0, %s21
      %p18 = scmp.ge.s32.totalorder %s17, 4
      %s24 = sphi 0, %s36
      %s25 = sphi 0, %s32
      %s26 = sphi 0, %s24
      %s27 = sphi 0, %s25
      %s28 = sphi 0, %s26
      %s29 = sphi 0, %s27
      %s41 = sphi 0, %s43
      %s44 = sphi 0, %s41
      %s45 = sphi 0, %s44
      %s61 = sphi 0, %s45
      %s65 = sphi 0, %s65
      %s67 = sphi 0, %s65
      %s68 = sphi 0, %s67
      %s82 = sphi 0, %s68
      %s90 = sphi 0, %s92
      %s93 = sphi 0, %s90
      %s94 = sphi 0, %s93
      %s110 = sphi 0, %s94
      %s118 = sphi 0, %s120
      %s121 = sphi 0, %s118
      %s122 = sphi 0, %s121
      %s138 = sphi 0, %s122
    $region4: #{tpu_custom_call.1} parent=1 // loop_header_branch
      %20 = sbr.rel (%p18) target = $region8
    $region5: #{tpu_custom_call.1} parent=1 // loop_body
      %s22 = ssub.s32 %s17, 1
      %s23 = ssub.s32 %s17, 2
      %s30 = sadd.s32 1, %s25
      %p31 = scmp.ge.s32.totalorder %s30, 1
      %s32 = scalar_select %p31, 0, %s30
      %s33 = sadd.s32 1, %s24
      %s34 = scalar_select %p31, %s33, %s24
      %p35 = scmp.ge.s32.totalorder %s34, 2
      %s36 = scalar_select %p35, 0, %s34
      %s37 = ssub.s32 %s24, %s36
      %s38 = ssub.s32 %s25, %s32
      %s39 = sor.u32 %s37, %s38
      %p40 = scmp.eq.s32.totalorder %s39, 0
      %s42 = sadd.s32 %s41, 1
      %s43 = scalar_select %p40, %s41, %s42
      %p46 = pneg %p40
      %p47 = scmp.eq.s32.totalorder %s17, 1
      %p48 = por %p46, %p47
      %p49 = scmp.ne.s32.totalorder %s41, %s44
      %p50 = scmp.eq.s32.totalorder %s17, 0
      %p51 = por %p49, %p50
      %p52 = scmp.ne.s32.totalorder %s41, %s44
      %p53 = scmp.eq.s32.totalorder %s22, 1
      %p54 = por %p52, %p53
      %p55 = scmp.ne.s32.totalorder %s44, %s45
      %p56 = scmp.eq.s32.totalorder %s22, 0
      %p57 = por %p55, %p56
      %p58 = scmp.ne.s32.totalorder %s44, %s45
      %p59 = scmp.eq.s32.totalorder %s23, 1
      %p60 = por %p58, %p59
      %p62 = scmp.ne.s32.totalorder %s45, %s61
      %p63 = scmp.eq.s32.totalorder %s23, 0
      %p64 = por %p62, %p63
      %s66 = sadd.s32 %s65, 1
      %p69 = scmp.eq.s32.totalorder %s17, 1
      %p70 = scmp.ne.s32.totalorder %s65, %s67
      %p71 = scmp.eq.s32.totalorder %s17, 0
      %p72 = por %p70, %p71
      %p73 = scmp.ne.s32.totalorder %s65, %s67
      %p74 = scmp.eq.s32.totalorder %s22, 1
      %p75 = por %p73, %p74
      %p76 = scmp.ne.s32.totalorder %s67, %s68
      %p77 = scmp.eq.s32.totalorder %s22, 0
      %p78 = por %p76, %p77
      %p79 = scmp.ne.s32.totalorder %s67, %s68
      %p80 = scmp.eq.s32.totalorder %s23, 1
      %p81 = por %p79, %p80
      %p83 = scmp.ne.s32.totalorder %s68, %s82
      %p84 = scmp.eq.s32.totalorder %s23, 0
      %p85 = por %p83, %p84
      %s86 = ssub.s32 %s24, %s36
      %s87 = ssub.s32 %s25, %s32
      %s88 = sor.u32 %s86, %s87
      %p89 = scmp.eq.s32.totalorder %s88, 0
      %s91 = sadd.s32 %s90, 1
      %s92 = scalar_select %p89, %s90, %s91
      %p95 = pneg %p89
      %p96 = scmp.eq.s32.totalorder %s17, 1
      %p97 = por %p95, %p96
      %p98 = scmp.ne.s32.totalorder %s90, %s93
      %p99 = scmp.eq.s32.totalorder %s17, 0
      %p100 = por %p98, %p99
      %p101 = scmp.ne.s32.totalorder %s90, %s93
      %p102 = scmp.eq.s32.totalorder %s22, 1
      %p103 = por %p101, %p102
      %p104 = scmp.ne.s32.totalorder %s93, %s94
      %p105 = scmp.eq.s32.totalorder %s22, 0
      %p106 = por %p104, %p105
      %p107 = scmp.ne.s32.totalorder %s93, %s94
      %p108 = scmp.eq.s32.totalorder %s23, 1
      %p109 = por %p107, %p108
      %p111 = scmp.ne.s32.totalorder %s94, %s110
      %p112 = scmp.eq.s32.totalorder %s23, 0
      %p113 = por %p111, %p112
      %s114 = ssub.s32 %s24, %s36
      %s115 = ssub.s32 %s25, %s32
      %s116 = sor.u32 %s114, %s115
      %p117 = scmp.eq.s32.totalorder %s116, 0
      %s119 = sadd.s32 %s118, 1
      %s120 = scalar_select %p117, %s118, %s119
      %p123 = pneg %p117
      %p124 = scmp.eq.s32.totalorder %s17, 1
      %p125 = por %p123, %p124
      %p126 = scmp.ne.s32.totalorder %s118, %s121
      %p127 = scmp.eq.s32.totalorder %s17, 0
      %p128 = por %p126, %p127
      %p129 = scmp.ne.s32.totalorder %s118, %s121
      %p130 = scmp.eq.s32.totalorder %s22, 1
      %p131 = por %p129, %p130
      %p132 = scmp.ne.s32.totalorder %s121, %s122
      %p133 = scmp.eq.s32.totalorder %s22, 0
      %p134 = por %p132, %p133
      %p135 = scmp.ne.s32.totalorder %s121, %s122
      %p136 = scmp.eq.s32.totalorder %s23, 1
      %p137 = por %p135, %p136
      %p139 = scmp.ne.s32.totalorder %s122, %s138
      %p140 = scmp.eq.s32.totalorder %s23, 0
      %p141 = por %p139, %p140
      %p142 = scmp.le.s32.totalorder 1, %s17
      %p143 = scmp.lt.s32.totalorder %s17, 3
      %p144 = pnand %p142, %p143
      %p145 = pneg %p144
      // Predicated region
      $region9: #{tpu_custom_call.1} parent=5 // pred_check
        _
      $region10: #{tpu_custom_call.1} parent=5 // pred_check_branch
        %147 = sbr.rel (%p144) target = $region12
      $region11: #{tpu_custom_call.1} parent=5 // pred_region
        %s148 = ssub.s32 %s17, 1
        // Predicated region
        $region13: #{tpu_custom_call.1} parent=11 // pred_check
          %p149 = pneg %p78
        $region14: #{tpu_custom_call.1} parent=11 // pred_check_branch
          %151 = sbr.rel (%p149) target = $region16
        $region15: #{tpu_custom_call.1} parent=11 // pred_region
          %153 = vsyncadd [#allocation6], 0
          %s155 = sshll.u32 %s1, 4
          %s156 = int_to_ptr.hbm [resolvable:$true] %s155
          %s157 = sshll.u32 [#allocation5], 4
          %s158 = int_to_ptr.vmem [resolvable:$true] %s157
          %160 = dma.hbm_to_vmem [thread:$0]  %s156, 64, %s158, [#allocation6]
        $region16: #{tpu_custom_call.1} parent=11 // pred_fallthru
          _
      $region12: #{tpu_custom_call.1} parent=5 // pred_fallthru
        _
      %p161 = scmp.lt.s32.totalorder %s17, 2
      // Predicated region
      $region17: #{tpu_custom_call.1} parent=5 // pred_check
        %p162 = pneg %p161
      $region18: #{tpu_custom_call.1} parent=5 // pred_check_branch
        %164 = sbr.rel (%p162) target = $region20
      $region19: #{tpu_custom_call.1} parent=5 // pred_region
        // Predicated region
        $region21: #{tpu_custom_call.1} parent=19 // pred_check
          %p165 = pneg %p51
        $region22: #{tpu_custom_call.1} parent=19 // pred_check_branch
          %167 = sbr.rel (%p165) target = $region24
        $region23: #{tpu_custom_call.1} parent=19 // pred_region
          %s168 = sand.u32 %s41, 1
          %s169 = scalar_lea.sflag [#allocation3], %s168
          %s170 = sand.u32 %s41, 1
          %s171 = smul.addr %s170, 2
          %s172 = scalar_lea.vmem [#allocation2], %s171
          %s173 = smul.u32 2, %s25
          %175 = vsyncadd %s169, 0
          %s176 = smul.addr %s24, 2
          %s177 = sadd.s32 %s173, %s176
          %s178 = scalar_lea.hbm %s0, %s177
          %s180 = sshll.u32 %s178, 4
          %s181 = int_to_ptr.hbm [resolvable:$true] %s180
          %s182 = sshll.u32 %s172, 4
          %s183 = int_to_ptr.vmem [resolvable:$true] %s182
          %185 = dma.hbm_to_vmem [thread:$0]  %s181, 32, %s183, %s169
        $region24: #{tpu_custom_call.1} parent=19 // pred_fallthru
          _
      $region20: #{tpu_custom_call.1} parent=5 // pred_fallthru
        _
      %p186 = scmp.le.s32.totalorder 1, %s17
      %p187 = scmp.lt.s32.totalorder %s17, 3
      %p188 = pnand %p186, %p187
      %p189 = pneg %p188
      // Predicated region
      $region25: #{tpu_custom_call.1} parent=5 // pred_check
        _
      $region26: #{tpu_custom_call.1} parent=5 // pred_check_branch
        %191 = sbr.rel (%p188) target = $region28
      $region27: #{tpu_custom_call.1} parent=5 // pred_region
        %s192 = ssub.s32 %s17, 1
        %s193 = sand.u32 %s44, 1
        %s194 = scalar_lea.sflag [#allocation3], %s193
        %s195 = sand.u32 %s44, 1
        %s196 = smul.addr %s195, 2
        %s197 = scalar_lea.vmem [#allocation2], %s196
        // Predicated region
        $region29: #{tpu_custom_call.1} parent=27 // pred_check
          %p198 = pneg %p57
        $region30: #{tpu_custom_call.1} parent=27 // pred_check_branch
          %200 = sbr.rel (%p198) target = $region32
        $region31: #{tpu_custom_call.1} parent=27 // pred_region
          %202 = dma.done %s194, 32
        $region32: #{tpu_custom_call.1} parent=27 // pred_fallthru
          _
        // Predicated region
        $region33: #{tpu_custom_call.1} parent=27 // pred_check
          %p203 = pneg %p78
        $region34: #{tpu_custom_call.1} parent=27 // pred_check_branch
          %205 = sbr.rel (%p203) target = $region36
        $region35: #{tpu_custom_call.1} parent=27 // pred_region
          %207 = dma.done [#allocation6], 64
        $region36: #{tpu_custom_call.1} parent=27 // pred_fallthru
          _
        %s208 = sand.u32 %s44, 1
        %s209 = scalar_lea.sflag [#allocation3], %s208
        %s210 = sand.u32 %s44, 1
        %s211 = smul.addr %s210, 2
        %s212 = scalar_lea.vmem [#allocation2], %s211
        %p213 = pneg %p57
        %p214 = pneg %p54
        %p215 = pneg %p78
        %p216 = pneg %p75
        %p217 = pneg %p106
        %p218 = pneg %p103
        %s219 = sand.u32 %s93, 1
        %s220 = scalar_lea.sflag [#allocation4], %s219
        %s221 = sand.u32 %s93, 1
        %s222 = smul.addr %s221, 184
        %s223 = scalar_lea.vmem [#allocation7], %s222
        %p224 = pneg %p134
        %p225 = pneg %p131
        %s226 = smul.u32 2, %s27
        %p227 = scmp.lt.s32.totalorder %s26, 1
        %s228 = scalar_select %p227, %s26, 1
        %p229 = scmp.lt.s32.totalorder %s226, 1
        %s230 = scalar_select %p229, %s226, 1
        %s231 = smul.addr %s228, 2
        %s232 = sadd.s32 %s230, %s231
        %s233 = smul.addr %s232, 4
        %s234 = scalar_lea.vmem %s3, %s233
        %s235 = smul.u32 2, %s27
        %s236 = smul.u32 2, %s27
        %s237 = smul.u32 2, %s27
        %p238 = scmp.lt.s32.totalorder %s26, 1
        %s239 = scalar_select %p238, %s26, 1
        %p240 = scmp.lt.s32.totalorder %s237, 1
        %s241 = scalar_select %p240, %s237, 1
        %s242 = smul.addr %s239, 2
        %s243 = sadd.s32 %s241, %s242
        %s244 = smul.addr %s243, 4
        %s245 = scalar_lea.vmem %s3, %s244
        %s246 = smul.u32 2, %s27
        %v248 = vld [vmem:[%s197] sm:$0x3]
        %vm249 = vcmp.gt.s32.totalorder %v248, 0
        %v250 = vsel %vm249, %v248, 0
        %vm251 = vcmp.lt.s32.totalorder %v250, 182
        %v252 = vsel %vm251, %v250, 182
        %v253 = vlaneseq
        %v254 = vshrl.u32 %v253, 7
        %v255 = vadd.s32 %v254, 8
        %v256 = vadd.s32 %v254, 16
        %v257 = vadd.s32 %v254, 24
        %v258 = vadd.s32 %v254, 32
        %v259 = vadd.s32 %v254, 40
        %v260 = vadd.s32 %v254, 48
        %v261 = vadd.s32 %v254, 56
        %v262 = vadd.s32 %v254, 64
        %v263 = vadd.s32 %v254, 72
        %v264 = vadd.s32 %v254, 80
        %v265 = vadd.s32 %v254, 88
        %v266 = vadd.s32 %v254, 96
        %v267 = vadd.s32 %v254, 104
        %v268 = vadd.s32 %v254, 112
        %v269 = vadd.s32 %v254, 120
        %v270 = vadd.s32 %v254, 128
        %v271 = vadd.s32 %v254, 136
        %v272 = vadd.s32 %v254, 144
        %v273 = vadd.s32 %v254, 152
        %v274 = vadd.s32 %v254, 160
        %v275 = vadd.s32 %v254, 168
        %v276 = vadd.s32 %v254, 176
        %v277 = vperm.slane %v252, 0
        %v278 = vperm.slane %v252, 1
        %vm279 = vcmp.eq.s32.totalorder %v254, %v277
        %vm280 = vcmp.eq.s32.totalorder %v254, %v278
        %vm281 = vcmp.eq.s32.totalorder %v255, %v277
        %vm282 = vcmp.eq.s32.totalorder %v255, %v278
        %vm283 = vcmp.eq.s32.totalorder %v256, %v277
        %vm284 = vcmp.eq.s32.totalorder %v256, %v278
        %vm285 = vcmp.eq.s32.totalorder %v257, %v277
        %vm286 = vcmp.eq.s32.totalorder %v257, %v278
        %vm287 = vcmp.eq.s32.totalorder %v258, %v277
        %vm288 = vcmp.eq.s32.totalorder %v258, %v278
        %vm289 = vcmp.eq.s32.totalorder %v259, %v277
        %vm290 = vcmp.eq.s32.totalorder %v259, %v278
        %vm291 = vcmp.eq.s32.totalorder %v260, %v277
        %vm292 = vcmp.eq.s32.totalorder %v260, %v278
        %vm293 = vcmp.eq.s32.totalorder %v261, %v277
        %vm294 = vcmp.eq.s32.totalorder %v261, %v278
        %vm295 = vcmp.eq.s32.totalorder %v262, %v277
        %vm296 = vcmp.eq.s32.totalorder %v262, %v278
        %vm297 = vcmp.eq.s32.totalorder %v263, %v277
        %vm298 = vcmp.eq.s32.totalorder %v263, %v278
        %vm299 = vcmp.eq.s32.totalorder %v264, %v277
        %vm300 = vcmp.eq.s32.totalorder %v264, %v278
        %vm301 = vcmp.eq.s32.totalorder %v265, %v277
        %vm302 = vcmp.eq.s32.totalorder %v265, %v278
        %vm303 = vcmp.eq.s32.totalorder %v266, %v277
        %vm304 = vcmp.eq.s32.totalorder %v266, %v278
        %vm305 = vcmp.eq.s32.totalorder %v267, %v277
        %vm306 = vcmp.eq.s32.totalorder %v267, %v278
        %vm307 = vcmp.eq.s32.totalorder %v268, %v277
        %vm308 = vcmp.eq.s32.totalorder %v268, %v278
        %vm309 = vcmp.eq.s32.totalorder %v269, %v277
        %vm310 = vcmp.eq.s32.totalorder %v269, %v278
        %vm311 = vcmp.eq.s32.totalorder %v270, %v277
        %vm312 = vcmp.eq.s32.totalorder %v270, %v278
        %vm313 = vcmp.eq.s32.totalorder %v271, %v277
        %vm314 = vcmp.eq.s32.totalorder %v271, %v278
        %vm315 = vcmp.eq.s32.totalorder %v272, %v277
        %vm316 = vcmp.eq.s32.totalorder %v272, %v278
        %vm317 = vcmp.eq.s32.totalorder %v273, %v277
        %vm318 = vcmp.eq.s32.totalorder %v273, %v278
        %vm319 = vcmp.eq.s32.totalorder %v274, %v277
        %vm320 = vcmp.eq.s32.totalorder %v274, %v278
        %vm321 = vcmp.eq.s32.totalorder %v275, %v277
        %vm322 = vcmp.eq.s32.totalorder %v275, %v278
        %vm323 = vcmp.eq.s32.totalorder %v276, %v277
        %vm324 = vcmp.eq.s32.totalorder %v276, %v278
        %v325 = vsel %vm279, 1, 0
        %v326 = vsel %vm280, 1, 0
        %v327 = vsel %vm281, 1, 0
        %v328 = vsel %vm282, 1, 0
        %v329 = vsel %vm283, 1, 0
        %v330 = vsel %vm284, 1, 0
        %v331 = vsel %vm285, 1, 0
        %v332 = vsel %vm286, 1, 0
        %v333 = vsel %vm287, 1, 0
        %v334 = vsel %vm288, 1, 0
        %v335 = vsel %vm289, 1, 0
        %v336 = vsel %vm290, 1, 0
        %v337 = vsel %vm291, 1, 0
        %v338 = vsel %vm292, 1, 0
        %v339 = vsel %vm293, 1, 0
        %v340 = vsel %vm294, 1, 0
        %v341 = vsel %vm295, 1, 0
        %v342 = vsel %vm296, 1, 0
        %v343 = vsel %vm297, 1, 0
        %v344 = vsel %vm298, 1, 0
        %v345 = vsel %vm299, 1, 0
        %v346 = vsel %vm300, 1, 0
        %v347 = vsel %vm301, 1, 0
        %v348 = vsel %vm302, 1, 0
        %v349 = vsel %vm303, 1, 0
        %v350 = vsel %vm304, 1, 0
        %v351 = vsel %vm305, 1, 0
        %v352 = vsel %vm306, 1, 0
        %v353 = vsel %vm307, 1, 0
        %v354 = vsel %vm308, 1, 0
        %v355 = vsel %vm309, 1, 0
        %v356 = vsel %vm310, 1, 0
        %v357 = vsel %vm311, 1, 0
        %v358 = vsel %vm312, 1, 0
        %v359 = vsel %vm313, 1, 0
        %v360 = vsel %vm314, 1, 0
        %v361 = vsel %vm315, 1, 0
        %v362 = vsel %vm316, 1, 0
        %v363 = vsel %vm317, 1, 0
        %v364 = vsel %vm318, 1, 0
        %v365 = vsel %vm319, 1, 0
        %v366 = vsel %vm320, 1, 0
        %v367 = vsel %vm321, 1, 0
        %v368 = vsel %vm322, 1, 0
        %v369 = vsel %vm323, 1, 0
        %v370 = vsel %vm324, 1, 0
        %v371 = vcvt.s32.f32 %v325
        %v372 = vcvt.s32.f32 %v326
        %v373 = vcvt.s32.f32 %v327
        %v374 = vcvt.s32.f32 %v328
        %v375 = vcvt.s32.f32 %v329
        %v376 = vcvt.s32.f32 %v330
        %v377 = vcvt.s32.f32 %v331
        %v378 = vcvt.s32.f32 %v332
        %v379 = vcvt.s32.f32 %v333
        %v380 = vcvt.s32.f32 %v334
        %v381 = vcvt.s32.f32 %v335
        %v382 = vcvt.s32.f32 %v336
        %v383 = vcvt.s32.f32 %v337
        %v384 = vcvt.s32.f32 %v338
        %v385 = vcvt.s32.f32 %v339
        %v386 = vcvt.s32.f32 %v340
        %v387 = vcvt.s32.f32 %v341
        %v388 = vcvt.s32.f32 %v342
        %v389 = vcvt.s32.f32 %v343
        %v390 = vcvt.s32.f32 %v344
        %v391 = vcvt.s32.f32 %v345
        %v392 = vcvt.s32.f32 %v346
        %v393 = vcvt.s32.f32 %v347
        %v394 = vcvt.s32.f32 %v348
        %v395 = vcvt.s32.f32 %v349
        %v396 = vcvt.s32.f32 %v350
        %v397 = vcvt.s32.f32 %v351
        %v398 = vcvt.s32.f32 %v352
        %v399 = vcvt.s32.f32 %v353
        %v400 = vcvt.s32.f32 %v354
        %v401 = vcvt.s32.f32 %v355
        %v402 = vcvt.s32.f32 %v356
        %v403 = vcvt.s32.f32 %v357
        %v404 = vcvt.s32.f32 %v358
        %v405 = vcvt.s32.f32 %v359
        %v406 = vcvt.s32.f32 %v360
        %v407 = vcvt.s32.f32 %v361
        %v408 = vcvt.s32.f32 %v362
        %v409 = vcvt.s32.f32 %v363
        %v410 = vcvt.s32.f32 %v364
        %v411 = vcvt.s32.f32 %v365
        %v412 = vcvt.s32.f32 %v366
        %v413 = vcvt.s32.f32 %v367
        %v414 = vcvt.s32.f32 %v368
        %v415 = vcvt.s32.f32 %v369
        %v416 = vcvt.s32.f32 %v370
        %v417 = vpack.c.bf16 %v372, %v371
        %v418 = vpack.c.bf16 %v374, %v373
        %v419 = vpack.c.bf16 %v376, %v375
        %v420 = vpack.c.bf16 %v378, %v377
        %v421 = vpack.c.bf16 %v380, %v379
        %v422 = vpack.c.bf16 %v382, %v381
        %v423 = vpack.c.bf16 %v384, %v383
        %v424 = vpack.c.bf16 %v386, %v385
        %v425 = vpack.c.bf16 %v388, %v387
        %v426 = vpack.c.bf16 %v390, %v389
        %v427 = vpack.c.bf16 %v392, %v391
        %v428 = vpack.c.bf16 %v394, %v393
        %v429 = vpack.c.bf16 %v396, %v395
        %v430 = vpack.c.bf16 %v398, %v397
        %v431 = vpack.c.bf16 %v400, %v399
        %v432 = vpack.c.bf16 %v402, %v401
        %v433 = vpack.c.bf16 %v404, %v403
        %v434 = vpack.c.bf16 %v406, %v405
        %v435 = vpack.c.bf16 %v408, %v407
        %v436 = vpack.c.bf16 %v410, %v409
        %v437 = vpack.c.bf16 %v412, %v411
        %v438 = vpack.c.bf16 %v414, %v413
        %v439 = vpack.c.bf16 %v416, %v415
        %440 = vst [vmem:[%s223] sm:$0xff] %v417
        %441 = vst [vmem:[%s223 + $0x8] sm:$0xff] %v418
        %442 = vst [vmem:[%s223 + $0x10] sm:$0xff] %v419
        %443 = vst [vmem:[%s223 + $0x18] sm:$0xff] %v420
        %444 = vst [vmem:[%s223 + $0x20] sm:$0xff] %v421
        %445 = vst [vmem:[%s223 + $0x28] sm:$0xff] %v422
        %446 = vst [vmem:[%s223 + $0x30] sm:$0xff] %v423
        %447 = vst [vmem:[%s223 + $0x38] sm:$0xff] %v424
        %448 = vst [vmem:[%s223 + $0x40] sm:$0xff] %v425
        %449 = vst [vmem:[%s223 + $0x48] sm:$0xff] %v426
        %450 = vst [vmem:[%s223 + $0x50] sm:$0xff] %v427
        %451 = vst [vmem:[%s223 + $0x58] sm:$0xff] %v428
        %452 = vst [vmem:[%s223 + $0x60] sm:$0xff] %v429
        %453 = vst [vmem:[%s223 + $0x68] sm:$0xff] %v430
        %454 = vst [vmem:[%s223 + $0x70] sm:$0xff] %v431
        %455 = vst [vmem:[%s223 + $0x78] sm:$0xff] %v432
        %456 = vst [vmem:[%s223 + $0x80] sm:$0xff] %v433
        %457 = vst [vmem:[%s223 + $0x88] sm:$0xff] %v434
        %458 = vst [vmem:[%s223 + $0x90] sm:$0xff] %v435
        %459 = vst [vmem:[%s223 + $0x98] sm:$0xff] %v436
        %460 = vst [vmem:[%s223 + $0xa0] sm:$0xff] %v437
        %461 = vst [vmem:[%s223 + $0xa8] sm:$0xff] %v438
        %462 = vst [vmem:[%s223 + $0xb0] sm:$0xff] %v439
        %v463 = vld [vmem:[#allocation5] sm:$0xf]
        %v464 = vld [vmem:[%s223] sm:$0xff]
        %v465 = vld [vmem:[%s223 + $0x8] sm:$0xff]
        %v466 = vld [vmem:[%s223 + $0x10] sm:$0xff]
        %v467 = vld [vmem:[%s223 + $0x18] sm:$0xff]
        %v468 = vld [vmem:[%s223 + $0x20] sm:$0xff]
        %v469 = vld [vmem:[%s223 + $0x28] sm:$0xff]
        %v470 = vld [vmem:[%s223 + $0x30] sm:$0xff]
        %v471 = vld [vmem:[%s223 + $0x38] sm:$0xff]
        %v472 = vld [vmem:[%s223 + $0x40] sm:$0xff]
        %v473 = vld [vmem:[%s223 + $0x48] sm:$0xff]
        %v474 = vld [vmem:[%s223 + $0x50] sm:$0xff]
        %v475 = vld [vmem:[%s223 + $0x58] sm:$0xff]
        %v476 = vld [vmem:[%s223 + $0x60] sm:$0xff]
        %v477 = vld [vmem:[%s223 + $0x68] sm:$0xff]
        %v478 = vld [vmem:[%s223 + $0x70] sm:$0xff]
        %v479 = vld [vmem:[%s223 + $0x78] sm:$0xff]
        %v480 = vld [vmem:[%s223 + $0x80] sm:$0xff]
        %v481 = vld [vmem:[%s223 + $0x88] sm:$0xff]
        %v482 = vld [vmem:[%s223 + $0x90] sm:$0xff]
        %v483 = vld [vmem:[%s223 + $0x98] sm:$0xff]
        %v484 = vld [vmem:[%s223 + $0xa0] sm:$0xff]
        %v485 = vld [vmem:[%s223 + $0xa8] sm:$0xff]
        %v486 = vld [vmem:[%s223 + $0xb0] sm:$0xff]
        %488 = vst [vmem:[#allocation1] ss:$4 sm:$0xff] %v463
        %v489 = vld.sshfl [vmem:[#allocation1] sm:$0xff pattern:$0x73625140]
        %v490 = vld.sshfl [vmem:[#allocation1 + $0x8] sm:$0xff pattern:$0x73625140]
        %v515 = vunpack.c.l.b16 %v464
        %v516 = vunpack.c.h.b16 %v464
        %v517 = vunpack.c.l.b16 %v465
        %v518 = vunpack.c.h.b16 %v465
        %v519 = vunpack.c.l.b16 %v466
        %v520 = vunpack.c.h.b16 %v466
        %v521 = vunpack.c.l.b16 %v467
        %v522 = vunpack.c.h.b16 %v467
        %v523 = vunpack.c.l.b16 %v468
        %v524 = vunpack.c.h.b16 %v468
        %v525 = vunpack.c.l.b16 %v469
        %v526 = vunpack.c.h.b16 %v469
        %v527 = vunpack.c.l.b16 %v470
        %v528 = vunpack.c.h.b16 %v470
        %v529 = vunpack.c.l.b16 %v471
        %v530 = vunpack.c.h.b16 %v471
        %v531 = vunpack.c.l.b16 %v472
        %v532 = vunpack.c.h.b16 %v472
        %v533 = vunpack.c.l.b16 %v473
        %v534 = vunpack.c.h.b16 %v473
        %v535 = vunpack.c.l.b16 %v474
        %v536 = vunpack.c.h.b16 %v474
        %v537 = vunpack.c.l.b16 %v475
        %v538 = vunpack.c.h.b16 %v475
        %v539 = vunpack.c.l.b16 %v476
        %v540 = vunpack.c.h.b16 %v476
        %v541 = vunpack.c.l.b16 %v477
        %v542 = vunpack.c.h.b16 %v477
        %v543 = vunpack.c.l.b16 %v478
        %v544 = vunpack.c.h.b16 %v478
        %v545 = vunpack.c.l.b16 %v479
        %v546 = vunpack.c.h.b16 %v479
        %v547 = vunpack.c.l.b16 %v480
        %v548 = vunpack.c.h.b16 %v480
        %v549 = vunpack.c.l.b16 %v481
        %v550 = vunpack.c.h.b16 %v481
        %v551 = vunpack.c.l.b16 %v482
        %v552 = vunpack.c.h.b16 %v482
        %v553 = vunpack.c.l.b16 %v483
        %v554 = vunpack.c.h.b16 %v483
        %v555 = vunpack.c.l.b16 %v484
        %v556 = vunpack.c.h.b16 %v484
        %v557 = vunpack.c.l.b16 %v485
        %v558 = vunpack.c.h.b16 %v485
        %v559 = vunpack.c.l.b16 %v486
        %v560 = vunpack.c.h.b16 %v486
        %v561 = vpack.c.b16 %v517, %v515
        %v562 = vpack.c.b16 %v518, %v516
        %v563 = vpack.c.b16 %v521, %v519
        %v564 = vpack.c.b16 %v522, %v520
        %v565 = vpack.c.b16 %v525, %v523
        %v566 = vpack.c.b16 %v526, %v524
        %v567 = vpack.c.b16 %v529, %v527
        %v568 = vpack.c.b16 %v530, %v528
        %v569 = vpack.c.b16 %v533, %v531
        %v570 = vpack.c.b16 %v534, %v532
        %v571 = vpack.c.b16 %v537, %v535
        %v572 = vpack.c.b16 %v538, %v536
        %v573 = vpack.c.b16 %v541, %v539
        %v574 = vpack.c.b16 %v542, %v540
        %v575 = vpack.c.b16 %v545, %v543
        %v576 = vpack.c.b16 %v546, %v544
        %v577 = vpack.c.b16 %v549, %v547
        %v578 = vpack.c.b16 %v550, %v548
        %v579 = vpack.c.b16 %v553, %v551
        %v580 = vpack.c.b16 %v554, %v552
        %v581 = vpack.c.b16 %v557, %v555
        %v582 = vpack.c.b16 %v558, %v556
        %v583 = vpack.c.b16 %v559, %v559
        %v584 = vpack.c.b16 %v560, %v560
        %vm607 = vcmask 457728
        %v608 = vsel %vm607, %v490, 0
        %vm610 = vcmask 1043456
        %v612 = vsel %vm610, %v583, 0
        %v615 = vsel %vm610, %v584, 0
        %617 = vmatpush.bf16.msra.mxu0 %v575
        %618 = vmatpush.bf16.msra.mxu0 %v573
        %619 = vmatpush.bf16.msra.mxu0 %v571
        %620 = vmatpush.bf16.msra.mxu0 %v569
        %621 = vmatpush.bf16.msra.mxu0 %v567
        %622 = vmatpush.bf16.msra.mxu0 %v565
        %623 = vmatpush.bf16.msra.mxu0 %v563
        %624 = vmatpush.bf16.msra.mxu0 %v561
        %625 = vmatmul.bf16.gmra.mxu0 %v489
        %v626 = vpop.f32.mrf.mxu0
        %v627 = vadd.f32 0.0, %v626
        %v628 = vpop.f32.mrf.mxu0
        %629 = vdwg.mxu0
        %630 = vmatpush.bf16.msra.mxu0 0
        %631 = vmatpush.bf16.msra.mxu0 0
        %632 = vmatpush.bf16.msra.mxu0 0
        %633 = vmatpush.bf16.msra.mxu0 0
        %634 = vmatpush.bf16.msra.mxu0 %v612
        %635 = vmatpush.bf16.msra.mxu0 %v581
        %636 = vmatpush.bf16.msra.mxu0 %v579
        %637 = vmatpush.bf16.msra.mxu0 %v577
        %638 = vmatmul.bf16.gmra.mxu0 %v608
        %v639 = vpop.f32.mrf.mxu0
        %v640 = vadd.f32 %v627, %v639
        %v641 = vpop.f32.mrf.mxu0
        %642 = vdwg.mxu0
        %643 = vmatpush.bf16.msra.mxu0 %v576
        %644 = vmatpush.bf16.msra.mxu0 %v574
        %645 = vmatpush.bf16.msra.mxu0 %v572
        %646 = vmatpush.bf16.msra.mxu0 %v570
        %647 = vmatpush.bf16.msra.mxu0 %v568
        %648 = vmatpush.bf16.msra.mxu0 %v566
        %649 = vmatpush.bf16.msra.mxu0 %v564
        %650 = vmatpush.bf16.msra.mxu0 %v562
        %651 = vmatmul.bf16.gmra.mxu0 %v489
        %v652 = vpop.f32.mrf.mxu0
        %v653 = vadd.f32 0.0, %v652
        %v654 = vpop.f32.mrf.mxu0
        %655 = vdwg.mxu0
        %656 = vmatpush.bf16.msra.mxu0 0
        %657 = vmatpush.bf16.msra.mxu0 0
        %658 = vmatpush.bf16.msra.mxu0 0
        %659 = vmatpush.bf16.msra.mxu0 0
        %660 = vmatpush.bf16.msra.mxu0 %v615
        %661 = vmatpush.bf16.msra.mxu0 %v582
        %662 = vmatpush.bf16.msra.mxu0 %v580
        %663 = vmatpush.bf16.msra.mxu0 %v578
        %664 = vmatmul.bf16.gmra.mxu0 %v608
        %v665 = vpop.f32.mrf.mxu0
        %v666 = vadd.f32 %v653, %v665
        %v667 = vpop.f32.mrf.mxu0
        %668 = vdwg.mxu0
        %v669 = vtanh.pop %v640
        %v670 = vtanh.pop %v666
        %v673 = vrot.slane %v670, 4
        %v674 = vsel %vm610, %v669, %v673
        %676 = vst [vmem:[%s245] sm:$0x77] %v674
        %s677 = sand.u32 %s93, 1
        %s678 = scalar_lea.sflag [#allocation4], %s677
        %s679 = sand.u32 %s93, 1
        %s680 = smul.addr %s679, 184
        %s681 = scalar_lea.vmem [#allocation7], %s680
        %s682 = smul.u32 2, %s27
        %p683 = scmp.lt.s32.totalorder %s26, 1
        %s684 = scalar_select %p683, %s26, 1
        %p685 = scmp.lt.s32.totalorder %s682, 1
        %s686 = scalar_select %p685, %s682, 1
        %s687 = smul.addr %s684, 2
        %s688 = sadd.s32 %s686, %s687
        %s689 = smul.addr %s688, 4
        %s690 = scalar_lea.vmem %s3, %s689
        // Predicated region
        $region37: #{tpu_custom_call.1} parent=27 // pred_check
          %p691 = pneg %p103
        $region38: #{tpu_custom_call.1} parent=27 // pred_check_branch
          %693 = sbr.rel (%p691) target = $region40
        $region39: #{tpu_custom_call.1} parent=27 // pred_region
          %s694 = smul.u32 2, %s27
          %696 = vsyncadd %s678, 0
          %s697 = smul.addr %s26, 46
          %s698 = sadd.s32 %s694, %s697
          %s699 = smul.addr %s698, 4
          %s700 = scalar_lea.hbm %s2, %s699
          %s701 = sshll.u32 %s681, 4
          %s702 = int_to_ptr.vmem [resolvable:$true] %s701
          %s703 = sshll.u32 %s700, 4
          %s704 = int_to_ptr.hbm [resolvable:$true] %s703
          %709 = dma.vmem_to_hbm [thread:$0]  %s702, 2944, %s704, %s678, 128, 128, 8
        $region40: #{tpu_custom_call.1} parent=27 // pred_fallthru
          _
        // Predicated region
        $region41: #{tpu_custom_call.1} parent=27 // pred_check
          %p710 = pneg %p131
        $region42: #{tpu_custom_call.1} parent=27 // pred_check_branch
          %712 = sbr.rel (%p710) target = $region44
        $region43: #{tpu_custom_call.1} parent=27 // pred_region
          %s713 = smul.u32 2, %s27
        $region44: #{tpu_custom_call.1} parent=27 // pred_fallthru
          _
      $region28: #{tpu_custom_call.1} parent=5 // pred_fallthru
        _
      %p714 = scmp.le.s32.totalorder 2, %s17
      // Predicated region
      $region45: #{tpu_custom_call.1} parent=5 // pred_check
        %p715 = pneg %p714
      $region46: #{tpu_custom_call.1} parent=5 // pred_check_branch
        %717 = sbr.rel (%p715) target = $region48
      $region47: #{tpu_custom_call.1} parent=5 // pred_region
        %s718 = ssub.s32 %s17, 2
        // Predicated region
        $region49: #{tpu_custom_call.1} parent=47 // pred_check
          %p719 = pneg %p109
        $region50: #{tpu_custom_call.1} parent=47 // pred_check_branch
          %721 = sbr.rel (%p719) target = $region52
        $region51: #{tpu_custom_call.1} parent=47 // pred_region
          %s722 = sand.u32 %s94, 1
          %s723 = scalar_lea.sflag [#allocation4], %s722
          %s724 = sand.u32 %s94, 1
          %s725 = smul.addr %s724, 184
          %s726 = scalar_lea.vmem [#allocation7], %s725
          %728 = dma.done %s723, 2944
        $region52: #{tpu_custom_call.1} parent=47 // pred_fallthru
          _
        // Predicated region
        $region53: #{tpu_custom_call.1} parent=47 // pred_check
          %p729 = pneg %p137
        $region54: #{tpu_custom_call.1} parent=47 // pred_check_branch
          %731 = sbr.rel (%p729) target = $region56
        $region55: #{tpu_custom_call.1} parent=47 // pred_region
          %s732 = smul.u32 2, %s29
          %p733 = scmp.lt.s32.totalorder %s28, 1
          %s734 = scalar_select %p733, %s28, 1
          %p735 = scmp.lt.s32.totalorder %s732, 1
          %s736 = scalar_select %p735, %s732, 1
          %s737 = smul.addr %s734, 2
          %s738 = sadd.s32 %s736, %s737
          %s739 = smul.addr %s738, 4
          %s740 = scalar_lea.vmem %s3, %s739
        $region56: #{tpu_custom_call.1} parent=47 // pred_fallthru
          _
      $region48: #{tpu_custom_call.1} parent=5 // pred_fallthru
        _
    $region6: #{tpu_custom_call.1} parent=1 // loop_footer
      %s21 = sadd.s32 1, %s17
    $region7: #{tpu_custom_call.1} parent=1 // loop_footer_branch
      %16 = sbr.rel target = $region3
    $region8: #{tpu_custom_call.1} parent=1 // loop_exit
      _
    %741 = vsyncpa [#allocation3], 1
    %s742 = scalar_lea.sflag [#allocation3], 1
    %743 = vsyncpa %s742, 1
    %744 = vsyncpa [#allocation6], 1
    %745 = vsyncpa [#allocation4], 1
    %s746 = scalar_lea.sflag [#allocation4], 1
    %747 = vsyncpa %s746, 1

</llo_original>
